<compile_context>
chip_gen: v5e
topology: v5e:2x2
jax: 0.10.0
libtpu: 0.0.40
codegen_flags: <defaults>
</compile_context>

<pallas_src>
import jax
import jax.numpy as jnp
from jax.experimental import pallas as pl
from jax.experimental.pallas import tpu as pltpu


def _fused_gcn_kernel(x_ref, a_ref, w1_ref, w2_ref, w3_ref, b_ref, o_ref):
    """relu(A@(X@W1)+b1) -> relu(A@(h1@W2)+b2) -> A@(h2@W3)+b3, all VMEM-resident."""
    a = a_ref[...]          # (N, N) bf16 — loaded once, reused by all three layers
    biases = b_ref[...]     # (3, Hmax) f32 — all three biases in a single DMA

    def layer(h_bf16, w_ref, bias_row, relu):
        support = jnp.dot(h_bf16, w_ref[...],
                          preferred_element_type=jnp.float32)
        out = jnp.dot(a, support.astype(jnp.bfloat16),
                      preferred_element_type=jnp.float32)
        out = out + bias_row                       # (1, width) f32 broadcast
        return jnp.maximum(out, 0.0) if relu else out

    h1 = layer(x_ref[...], w1_ref, biases[0:1, :w1_ref.shape[1]], True)
    h2 = layer(h1.astype(jnp.bfloat16), w2_ref, biases[1:2, :w2_ref.shape[1]], True)
    out = layer(h2.astype(jnp.bfloat16), w3_ref, biases[2:3, :w3_ref.shape[1]], False)
    o_ref[...] = out.astype(o_ref.dtype)


def prepare_inputs(features, adjacency_matrix, params):
    """One-time prep (per graph / parameter set): cast to kernel dtypes and pack
    biases, so the per-call forward path contains nothing but the pallas_call."""
    (w1, b1), (w2, b2), (w3, b3) = params
    bmax = max(b1.shape[0], b2.shape[0], b3.shape[0])
    bias_pack = jnp.zeros((3, bmax), jnp.float32)
    bias_pack = bias_pack.at[0, : b1.shape[0]].set(b1.astype(jnp.float32))
    bias_pack = bias_pack.at[1, : b2.shape[0]].set(b2.astype(jnp.float32))
    bias_pack = bias_pack.at[2, : b3.shape[0]].set(b3.astype(jnp.float32))
    return (features.astype(jnp.bfloat16),            # X: bf16, true shape
            adjacency_matrix.astype(jnp.bfloat16),    # A: 0/1, exact in bf16
            w1.astype(jnp.bfloat16),
            w2.astype(jnp.bfloat16),
            w3.astype(jnp.bfloat16),
            bias_pack)


@jax.jit
def social_gcn_forward(x_bf16, a_bf16, w1, w2, w3, bias_pack):
    """SocialGCN.forward: relu(gc1) -> relu(gc2) -> gc3, fused in one kernel."""
    n, in_dim = x_bf16.shape
    hid = w1.shape[1]
    out_dim = w3.shape[1]

    in_bytes = sum(int(t.size) * t.dtype.itemsize
                   for t in (x_bf16, a_bf16, w1, w2, w3, bias_pack))
    out_bytes = n * out_dim * 4
    # Inputs + output + f32 intermediates (support / hidden activations), with headroom.
    vmem_limit = max(4 * (in_bytes + out_bytes) + 8 * n * hid * 4, 4 << 20)

    flops = (2 * n * in_dim * hid + 2 * n * n * hid          # layer 1
             + 2 * n * hid * hid + 2 * n * n * hid           # layer 2
             + 2 * n * hid * out_dim + 2 * n * n * out_dim)  # layer 3

    vmem = pl.BlockSpec(memory_space=pltpu.MemorySpace.VMEM)

    return pl.pallas_call(
        _fused_gcn_kernel,
        out_shape=jax.ShapeDtypeStruct((n, out_dim), jnp.float32),
        in_specs=[vmem] * 6,
        out_specs=vmem,
        compiler_params=pltpu.CompilerParams(vmem_limit_bytes=int(vmem_limit)),
        cost_estimate=pl.CostEstimate(flops=flops, transcendentals=0,
                                      bytes_accessed=in_bytes + out_bytes),
    )(x_bf16, a_bf16, w1, w2, w3, bias_pack)


def xavier_uniform(key, fan_in, fan_out, dtype=jnp.float32):
    bound = float(jnp.sqrt(6.0 / (fan_in + fan_out)))
    return jax.random.uniform(key, (fan_in, fan_out), dtype=dtype,
                              minval=-bound, maxval=bound)


def init_params(key, input_dim, hidden_dim, output_dim):
    k1, k2, k3 = jax.random.split(key, 3)
    return ((xavier_uniform(k1, input_dim, hidden_dim),
             jnp.zeros((hidden_dim,), jnp.float32)),
            (xavier_uniform(k2, hidden_dim, hidden_dim),
             jnp.zeros((hidden_dim,), jnp.float32)),
            (xavier_uniform(k3, hidden_dim, output_dim),
             jnp.zeros((output_dim,), jnp.float32)))


if __name__ == "__main__":
    num_nodes = 64       # N (adjacency is N x N)
    input_dim = 15       # matches the module's num_features = 15
    hidden_dim = 32
    output_dim = 8

    key = jax.random.PRNGKey(0)
    k_feat, k_adj, k_param = jax.random.split(key, 3)

    # Node features  X: (N, input_dim)
    features = jax.random.normal(k_feat, (num_nodes, input_dim), jnp.float32)

    # Synthetic symmetric 0/1 adjacency (stands in for extractEdges('data.txt')).
    rand_adj = jax.random.uniform(k_adj, (num_nodes, num_nodes))
    adj_upper = (rand_adj > 0.9).astype(jnp.float32)
    adjacency_matrix = jnp.clip(adj_upper + adj_upper.T, 0.0, 1.0)
    adjacency_matrix = adjacency_matrix * (1.0 - jnp.eye(num_nodes))  # no self loops

    params = init_params(k_param, input_dim, hidden_dim, output_dim)

    # One-time prep (outside the per-call path), then a single-custom-call forward.
    x_bf16, a_bf16, w1_bf, w2_bf, w3_bf, bias_pack = prepare_inputs(
        features, adjacency_matrix, params)
    out = social_gcn_forward(x_bf16, a_bf16, w1_bf, w2_bf, w3_bf, bias_pack)
    out = jax.block_until_ready(out)
    assert out.shape == (num_nodes, output_dim)

    (w1, b1), (w2, b2), (w3, b3) = params

    # Reference 1: identical math to the kernel (bf16 matmul operands, f32 accum).
    def ref_layer_bf16(h_bf16, w_bf16, b, relu):
        s = jnp.dot(h_bf16, w_bf16, preferred_element_type=jnp.float32)
        y = jnp.dot(a_bf16, s.astype(jnp.bfloat16),
                    preferred_element_type=jnp.float32) + b
        return jnp.maximum(y, 0.0) if relu else y

    r = ref_layer_bf16(x_bf16, w1_bf, b1, True)
    r = ref_layer_bf16(r.astype(jnp.bfloat16), w2_bf, b2, True)
    r = ref_layer_bf16(r.astype(jnp.bfloat16), w3_bf, b3, False)
    assert jnp.allclose(out, r, atol=1e-2, rtol=1e-2), "mismatch vs bf16 reference"

    # Reference 2: pure f32 module semantics; bf16 MXU inputs give <~1% norm error.
    def ref_layer_f32(h, w, b, relu):
        y = adjacency_matrix @ (h @ w) + b
        return jnp.maximum(y, 0.0) if relu else y

    rf = ref_layer_f32(features, w1, b1, True)
    rf = ref_layer_f32(rf, w2, b2, True)
    rf = ref_layer_f32(rf, w3, b3, False)
    rel_err = jnp.linalg.norm(out - rf) / (jnp.linalg.norm(rf) + 1e-12)
    assert float(rel_err) < 3e-2, f"relative error vs f32 reference too high: {rel_err}"

    print("KERNEL_OK")
</pallas_src>

<mosaic_0001>
module attributes {stable_mosaic.version = 11 : i64} {
  func.func @_fused_gcn_kernel(%arg0: memref<64x15xbf16, #tpu.memory_space<vmem>>, %arg1: memref<64x64xbf16, #tpu.memory_space<vmem>>, %arg2: memref<15x32xbf16, #tpu.memory_space<vmem>>, %arg3: memref<32x32xbf16, #tpu.memory_space<vmem>>, %arg4: memref<32x8xbf16, #tpu.memory_space<vmem>>, %arg5: memref<3x32xf32, #tpu.memory_space<vmem>>, %arg6: memref<64x8xf32, #tpu.memory_space<vmem>>) attributes {dimension_semantics = [], scalar_prefetch = 0 : i64, scratch_operands = 0 : i64, tpu.core_type = #tpu.core_type<tc>} {
    %c0 = arith.constant 0 : index
    %c0_0 = arith.constant 0 : index
    %0 = vector.load %arg1[%c0, %c0_0] : memref<64x64xbf16, #tpu.memory_space<vmem>>, vector<64x64xbf16>
    %c0_1 = arith.constant 0 : index
    %c0_2 = arith.constant 0 : index
    %1 = vector.load %arg5[%c0_1, %c0_2] : memref<3x32xf32, #tpu.memory_space<vmem>>, vector<3x32xf32>
    %c0_3 = arith.constant 0 : index
    %c0_4 = arith.constant 0 : index
    %2 = vector.load %arg0[%c0_3, %c0_4] : memref<64x15xbf16, #tpu.memory_space<vmem>>, vector<64x15xbf16>
    %3 = vector.extract_strided_slice %1 {offsets = [0, 0], sizes = [1, 32], strides = [1, 1]} : vector<3x32xf32> to vector<1x32xf32>
    %c0_5 = arith.constant 0 : index
    %c0_6 = arith.constant 0 : index
    %4 = vector.load %arg2[%c0_5, %c0_6] : memref<15x32xbf16, #tpu.memory_space<vmem>>, vector<15x32xbf16>
    %cst = arith.constant dense<0.000000e+00> : vector<64x32xf32>
    %5 = tpu.matmul %2, %4, %cst {dimension_numbers = #tpu.dot_dimension_numbers<[1], [0], [0], [1], [0, 0, 1, 1], [], []>} : vector<64x15xbf16>, vector<15x32xbf16>, vector<64x32xf32> -> vector<64x32xf32>
    %6 = arith.truncf %5 : vector<64x32xf32> to vector<64x32xbf16>
    %cst_7 = arith.constant dense<0.000000e+00> : vector<64x32xf32>
    %7 = tpu.matmul %0, %6, %cst_7 {dimension_numbers = #tpu.dot_dimension_numbers<[1], [0], [0], [1], [0, 0, 1, 1], [], []>} : vector<64x64xbf16>, vector<64x32xbf16>, vector<64x32xf32> -> vector<64x32xf32>
    %8 = vector.broadcast %3 : vector<1x32xf32> to vector<64x32xf32>
    %9 = arith.addf %7, %8 : vector<64x32xf32>
    %cst_8 = arith.constant 0.000000e+00 : f32
    %10 = vector.broadcast %cst_8 : f32 to vector<64x32xf32>
    %11 = arith.maximumf %9, %10 : vector<64x32xf32>
    %12 = arith.truncf %11 : vector<64x32xf32> to vector<64x32xbf16>
    %13 = vector.extract_strided_slice %1 {offsets = [1, 0], sizes = [1, 32], strides = [1, 1]} : vector<3x32xf32> to vector<1x32xf32>
    %c0_9 = arith.constant 0 : index
    %c0_10 = arith.constant 0 : index
    %14 = vector.load %arg3[%c0_9, %c0_10] : memref<32x32xbf16, #tpu.memory_space<vmem>>, vector<32x32xbf16>
    %cst_11 = arith.constant dense<0.000000e+00> : vector<64x32xf32>
    %15 = tpu.matmul %12, %14, %cst_11 {dimension_numbers = #tpu.dot_dimension_numbers<[1], [0], [0], [1], [0, 0, 1, 1], [], []>} : vector<64x32xbf16>, vector<32x32xbf16>, vector<64x32xf32> -> vector<64x32xf32>
    %16 = arith.truncf %15 : vector<64x32xf32> to vector<64x32xbf16>
    %cst_12 = arith.constant dense<0.000000e+00> : vector<64x32xf32>
    %17 = tpu.matmul %0, %16, %cst_12 {dimension_numbers = #tpu.dot_dimension_numbers<[1], [0], [0], [1], [0, 0, 1, 1], [], []>} : vector<64x64xbf16>, vector<64x32xbf16>, vector<64x32xf32> -> vector<64x32xf32>
    %18 = vector.broadcast %13 : vector<1x32xf32> to vector<64x32xf32>
    %19 = arith.addf %17, %18 : vector<64x32xf32>
    %cst_13 = arith.constant 0.000000e+00 : f32
    %20 = vector.broadcast %cst_13 : f32 to vector<64x32xf32>
    %21 = arith.maximumf %19, %20 : vector<64x32xf32>
    %22 = arith.truncf %21 : vector<64x32xf32> to vector<64x32xbf16>
    %23 = vector.extract_strided_slice %1 {offsets = [2, 0], sizes = [1, 8], strides = [1, 1]} : vector<3x32xf32> to vector<1x8xf32>
    %c0_14 = arith.constant 0 : index
    %c0_15 = arith.constant 0 : index
    %24 = vector.load %arg4[%c0_14, %c0_15] : memref<32x8xbf16, #tpu.memory_space<vmem>>, vector<32x8xbf16>
    %cst_16 = arith.constant dense<0.000000e+00> : vector<64x8xf32>
    %25 = tpu.matmul %22, %24, %cst_16 {dimension_numbers = #tpu.dot_dimension_numbers<[1], [0], [0], [1], [0, 0, 1, 1], [], []>} : vector<64x32xbf16>, vector<32x8xbf16>, vector<64x8xf32> -> vector<64x8xf32>
    %26 = arith.truncf %25 : vector<64x8xf32> to vector<64x8xbf16>
    %cst_17 = arith.constant dense<0.000000e+00> : vector<64x8xf32>
    %27 = tpu.matmul %0, %26, %cst_17 {dimension_numbers = #tpu.dot_dimension_numbers<[1], [0], [0], [1], [0, 0, 1, 1], [], []>} : vector<64x64xbf16>, vector<64x8xbf16>, vector<64x8xf32> -> vector<64x8xf32>
    %28 = vector.broadcast %23 : vector<1x8xf32> to vector<64x8xf32>
    %29 = arith.addf %27, %28 : vector<64x8xf32>
    %c0_18 = arith.constant 0 : index
    %c0_19 = arith.constant 0 : index
    %30 = vector.load %arg6[%c0_18, %c0_19] : memref<64x8xf32, #tpu.memory_space<vmem>>, vector<64x8xf32>
    tpu.vector_store %arg6[%c0_18, %c0_19], %29 {strides = array<i32>} : memref<64x8xf32, #tpu.memory_space<vmem>>, vector<64x8xf32>,
    return
  }
}

</mosaic_0001>

<llo_original>
// kernel: social_gcn_forward.1
$region0: #{social_gcn_forward.1}
  #allocation0 [shape = 'u32[]', space=smem, size = 0x4, offset = 0x4, fixed_abs, tag = 'smem constant byte address 0x4 - core index']
  #allocation1 [shape = 'u32[72,128]{1,0:T(1,128)}', space=vmem, size = 0x9000, scoped, tag = 'internal scratch']
  %s0 = inlined_call_operand.vmem [shape: bf16[64,15], index: 0, kind: input, shape index: {}]
  %s1 = inlined_call_operand.vmem [shape: bf16[64,64], index: 1, kind: input, shape index: {}]
  %s2 = inlined_call_operand.vmem [shape: bf16[15,32], index: 2, kind: input, shape index: {}]
  %s3 = inlined_call_operand.vmem [shape: bf16[32,32], index: 3, kind: input, shape index: {}]
  %s4 = inlined_call_operand.vmem [shape: bf16[32,8], index: 4, kind: input, shape index: {}]
  %s5 = inlined_call_operand.vmem [shape: f32[3,32], index: 5, kind: input, shape index: {}]
  %s6 = inlined_call_operand.vmem [shape: f32[64,8], index: 6, kind: output, shape index: {}]
  %s7 = sld [smem:[#allocation0]]
  $region34: #{social_gcn_forward.1} parent=0
    _
  %s9 = ssub.s32 1, %s7
  %s10 = scalar_select 0, %s9, %s7
  // Predicated region
  $region2: #{social_gcn_forward.1} parent=0 // pred_check
    _
  $region3: #{social_gcn_forward.1} parent=0 // pred_check_branch
    %12 = sbr.rel (0) target = $region5
  $region4: #{social_gcn_forward.1} parent=0 // pred_region
    _
  $region5: #{social_gcn_forward.1} parent=0 // pred_fallthru
    _
  // Predicated region
  $region6: #{social_gcn_forward.1} parent=0 // pred_check
    _
  $region7: #{social_gcn_forward.1} parent=0 // pred_check_branch
    %14 = sbr.rel (0) target = $region9
  $region8: #{social_gcn_forward.1} parent=0 // pred_region
    _
  $region9: #{social_gcn_forward.1} parent=0 // pred_fallthru
    _
  // Predicated region
  $region10: #{social_gcn_forward.1} parent=0 // pred_check
    _
  $region11: #{social_gcn_forward.1} parent=0 // pred_check_branch
    %16 = sbr.rel (0) target = $region13
  $region12: #{social_gcn_forward.1} parent=0 // pred_region
    _
  $region13: #{social_gcn_forward.1} parent=0 // pred_fallthru
    _
  // Predicated region
  $region14: #{social_gcn_forward.1} parent=0 // pred_check
    _
  $region15: #{social_gcn_forward.1} parent=0 // pred_check_branch
    %18 = sbr.rel (0) target = $region17
  $region16: #{social_gcn_forward.1} parent=0 // pred_region
    _
  $region17: #{social_gcn_forward.1} parent=0 // pred_fallthru
    _
  // Predicated region
  $region18: #{social_gcn_forward.1} parent=0 // pred_check
    _
  $region19: #{social_gcn_forward.1} parent=0 // pred_check_branch
    %20 = sbr.rel (0) target = $region21
  $region20: #{social_gcn_forward.1} parent=0 // pred_region
    _
  $region21: #{social_gcn_forward.1} parent=0 // pred_fallthru
    _
  // Predicated region
  $region22: #{social_gcn_forward.1} parent=0 // pred_check
    _
  $region23: #{social_gcn_forward.1} parent=0 // pred_check_branch
    %22 = sbr.rel (0) target = $region25
  $region24: #{social_gcn_forward.1} parent=0 // pred_region
    _
  $region25: #{social_gcn_forward.1} parent=0 // pred_fallthru
    _
  %v24 = vld [vmem:[%s1] sm:$0xf]
  %v25 = vld [vmem:[%s1 + $0x4] sm:$0xf]
  %v26 = vld [vmem:[%s1 + $0x8] sm:$0xf]
  %v27 = vld [vmem:[%s1 + $0xc] sm:$0xf]
  %v28 = vld [vmem:[%s1 + $0x10] sm:$0xf]
  %v29 = vld [vmem:[%s1 + $0x14] sm:$0xf]
  %v30 = vld [vmem:[%s1 + $0x18] sm:$0xf]
  %v31 = vld [vmem:[%s1 + $0x1c] sm:$0xf]
  %v32 = vld [vmem:[%s5] sm:$0x7]
  %v33 = vld [vmem:[%s0] sm:$0xf]
  %v34 = vld [vmem:[%s0 + $0x4] sm:$0xf]
  %v35 = vld [vmem:[%s0 + $0x8] sm:$0xf]
  %v36 = vld [vmem:[%s0 + $0xc] sm:$0xf]
  %v37 = vld [vmem:[%s0 + $0x10] sm:$0xf]
  %v38 = vld [vmem:[%s0 + $0x14] sm:$0xf]
  %v39 = vld [vmem:[%s0 + $0x18] sm:$0xf]
  %v40 = vld [vmem:[%s0 + $0x1c] sm:$0xf]
  %v41 = vld [vmem:[%s2] sm:$0xf]
  %v42 = vld [vmem:[%s2 + $0x4] sm:$0xf]
  %v51 = vunpack.c.l.b16 %v33
  %v52 = vunpack.c.l.b16 %v34
  %v53 = vunpack.c.l.b16 %v35
  %v54 = vunpack.c.l.b16 %v36
  %v55 = vunpack.c.l.b16 %v37
  %v56 = vunpack.c.l.b16 %v38
  %v57 = vunpack.c.l.b16 %v39
  %v58 = vunpack.c.l.b16 %v40
  %v59 = vpack.c.b16 %v52, %v51
  %v60 = vpack.c.b16 %v54, %v53
  %v61 = vpack.c.b16 %v56, %v55
  %v62 = vpack.c.b16 %v58, %v57
  %v65 = vunpack.c.l.b16 %v41
  %v66 = vunpack.c.l.b16 %v42
  %v67 = vpack.c.b16 %v66, %v65
  %vm68 = vcmask 121856
  %v70 = vsel %vm68, %v59, 0
  %v73 = vsel %vm68, %v60, 0
  %v76 = vsel %vm68, %v61, 0
  %v79 = vsel %vm68, %v62, 0
  %vm81 = vcmask 1046528
  %vm82 = vcmask 1047552
  %v83 = vsel %vm81, 4294967295, 65535
  %v84 = vsel %vm82, %v83, 0
  %v86 = vand.u32 %v67, %v84
  %88 = vmatpush.bf16.msra.mxu0 0
  %89 = vmatpush.bf16.msra.mxu0 0
  %90 = vmatpush.bf16.msra.mxu0 0
  %91 = vmatpush.bf16.msra.mxu0 0
  %92 = vmatpush.bf16.msra.mxu0 0
  %93 = vmatpush.bf16.msra.mxu0 0
  %94 = vmatpush.bf16.msra.mxu0 0
  %95 = vmatpush.bf16.msra.mxu0 %v86
  %96 = vmatmul.bf16.gmra.mxu0 %v70
  %v97 = vpop.f32.mrf.mxu0
  %v98 = vadd.f32 0.0, %v97
  %v99 = vpop.f32.mrf.mxu0
  %v100 = vadd.f32 0.0, %v99
  %101 = vmatmul.bf16.gmra.mxu0 %v73
  %v102 = vpop.f32.mrf.mxu0
  %v103 = vadd.f32 0.0, %v102
  %v104 = vpop.f32.mrf.mxu0
  %v105 = vadd.f32 0.0, %v104
  %106 = vmatmul.bf16.gmra.mxu0 %v76
  %v107 = vpop.f32.mrf.mxu0
  %v108 = vadd.f32 0.0, %v107
  %v109 = vpop.f32.mrf.mxu0
  %v110 = vadd.f32 0.0, %v109
  %111 = vmatmul.bf16.gmra.mxu0 %v79
  %v112 = vpop.f32.mrf.mxu0
  %v113 = vadd.f32 0.0, %v112
  %v114 = vpop.f32.mrf.mxu0
  %v115 = vadd.f32 0.0, %v114
  %116 = vdwg.mxu0
  %v117 = vpack.c.bf16 %v100, %v98
  %v118 = vpack.c.bf16 %v105, %v103
  %v119 = vpack.c.bf16 %v110, %v108
  %v120 = vpack.c.bf16 %v115, %v113
  %v121 = vperm.slane %v32, 0
  %v130 = vunpack.c.l.b16 %v24
  %v131 = vunpack.c.l.b16 %v25
  %v132 = vunpack.c.l.b16 %v26
  %v133 = vunpack.c.l.b16 %v27
  %v134 = vunpack.c.l.b16 %v28
  %v135 = vunpack.c.l.b16 %v29
  %v136 = vunpack.c.l.b16 %v30
  %v137 = vunpack.c.l.b16 %v31
  %v138 = vpack.c.b16 %v131, %v130
  %v139 = vpack.c.b16 %v133, %v132
  %v140 = vpack.c.b16 %v135, %v134
  %v141 = vpack.c.b16 %v137, %v136
  %vm142 = vcmask 523264
  %v144 = vsel %vm142, %v138, 0
  %v147 = vsel %vm142, %v139, 0
  %v150 = vsel %vm142, %v140, 0
  %v153 = vsel %vm142, %v141, 0
  %155 = vmatpush.bf16.msra.mxu0 0
  %156 = vmatpush.bf16.msra.mxu0 0
  %157 = vmatpush.bf16.msra.mxu0 0
  %158 = vmatpush.bf16.msra.mxu0 0
  %159 = vmatpush.bf16.msra.mxu0 %v120
  %160 = vmatpush.bf16.msra.mxu0 %v119
  %161 = vmatpush.bf16.msra.mxu0 %v118
  %162 = vmatpush.bf16.msra.mxu0 %v117
  %163 = vmatmul.bf16.gmra.mxu0 %v144
  %v164 = vpop.f32.mrf.mxu0
  %v165 = vadd.f32 %v121, %v164
  %v166 = vpop.f32.mrf.mxu0
  %v167 = vadd.f32 %v121, %v166
  %168 = vmatmul.bf16.gmra.mxu0 %v147
  %v169 = vpop.f32.mrf.mxu0
  %v170 = vadd.f32 %v121, %v169
  %v171 = vpop.f32.mrf.mxu0
  %v172 = vadd.f32 %v121, %v171
  %173 = vmatmul.bf16.gmra.mxu0 %v150
  %v174 = vpop.f32.mrf.mxu0
  %v175 = vadd.f32 %v121, %v174
  %v176 = vpop.f32.mrf.mxu0
  %v177 = vadd.f32 %v121, %v176
  %178 = vmatmul.bf16.gmra.mxu0 %v153
  %v179 = vpop.f32.mrf.mxu0
  %v180 = vadd.f32 %v121, %v179
  %v181 = vpop.f32.mrf.mxu0
  %v182 = vadd.f32 %v121, %v181
  %183 = vdwg.mxu0
  %v184 = vmax.f32 %v165, 0.0
  %v185 = vmax.f32 %v167, 0.0
  %v186 = vmax.f32 %v170, 0.0
  %v187 = vmax.f32 %v172, 0.0
  %v188 = vmax.f32 %v175, 0.0
  %v189 = vmax.f32 %v177, 0.0
  %v190 = vmax.f32 %v180, 0.0
  %v191 = vmax.f32 %v182, 0.0
  %v192 = vpack.c.bf16 %v185, %v184
  %v193 = vpack.c.bf16 %v187, %v186
  %v194 = vpack.c.bf16 %v189, %v188
  %v195 = vpack.c.bf16 %v191, %v190
  %v196 = vld [vmem:[%s3] sm:$0xf]
  %v197 = vld [vmem:[%s3 + $0x4] sm:$0xf]
  %v198 = vld [vmem:[%s3 + $0x8] sm:$0xf]
  %v199 = vld [vmem:[%s3 + $0xc] sm:$0xf]
  %v204 = vunpack.c.l.b16 %v196
  %v205 = vunpack.c.l.b16 %v197
  %v206 = vunpack.c.l.b16 %v198
  %v207 = vunpack.c.l.b16 %v199
  %v208 = vpack.c.b16 %v205, %v204
  %v209 = vpack.c.b16 %v207, %v206
  %vm212 = vcmask 261120
  %v214 = vsel %vm212, %v192, 0
  %v217 = vsel %vm212, %v193, 0
  %v220 = vsel %vm212, %v194, 0
  %v223 = vsel %vm212, %v195, 0
  %225 = vmatpush.bf16.msra.mxu0 0
  %226 = vmatpush.bf16.msra.mxu0 0
  %227 = vmatpush.bf16.msra.mxu0 0
  %228 = vmatpush.bf16.msra.mxu0 0
  %229 = vmatpush.bf16.msra.mxu0 0
  %230 = vmatpush.bf16.msra.mxu0 0
  %231 = vmatpush.bf16.msra.mxu0 %v209
  %232 = vmatpush.bf16.msra.mxu0 %v208
  %233 = vmatmul.bf16.gmra.mxu0 %v214
  %v234 = vpop.f32.mrf.mxu0
  %v235 = vadd.f32 0.0, %v234
  %v236 = vpop.f32.mrf.mxu0
  %v237 = vadd.f32 0.0, %v236
  %238 = vmatmul.bf16.gmra.mxu0 %v217
  %v239 = vpop.f32.mrf.mxu0
  %v240 = vadd.f32 0.0, %v239
  %v241 = vpop.f32.mrf.mxu0
  %v242 = vadd.f32 0.0, %v241
  %243 = vmatmul.bf16.gmra.mxu0 %v220
  %v244 = vpop.f32.mrf.mxu0
  %v245 = vadd.f32 0.0, %v244
  %v246 = vpop.f32.mrf.mxu0
  %v247 = vadd.f32 0.0, %v246
  %248 = vmatmul.bf16.gmra.mxu0 %v223
  %v249 = vpop.f32.mrf.mxu0
  %v250 = vadd.f32 0.0, %v249
  %v251 = vpop.f32.mrf.mxu0
  %v252 = vadd.f32 0.0, %v251
  %253 = vdwg.mxu0
  %v254 = vpack.c.bf16 %v237, %v235
  %v255 = vpack.c.bf16 %v242, %v240
  %v256 = vpack.c.bf16 %v247, %v245
  %v257 = vpack.c.bf16 %v252, %v250
  %v258 = vperm.slane %v32, 1
  %259 = vmatpush.bf16.msra.mxu0 0
  %260 = vmatpush.bf16.msra.mxu0 0
  %261 = vmatpush.bf16.msra.mxu0 0
  %262 = vmatpush.bf16.msra.mxu0 0
  %263 = vmatpush.bf16.msra.mxu0 %v257
  %264 = vmatpush.bf16.msra.mxu0 %v256
  %265 = vmatpush.bf16.msra.mxu0 %v255
  %266 = vmatpush.bf16.msra.mxu0 %v254
  %267 = vmatmul.bf16.gmra.mxu0 %v144
  %v268 = vpop.f32.mrf.mxu0
  %v269 = vadd.f32 %v258, %v268
  %v270 = vpop.f32.mrf.mxu0
  %v271 = vadd.f32 %v258, %v270
  %272 = vmatmul.bf16.gmra.mxu0 %v147
  %v273 = vpop.f32.mrf.mxu0
  %v274 = vadd.f32 %v258, %v273
  %v275 = vpop.f32.mrf.mxu0
  %v276 = vadd.f32 %v258, %v275
  %277 = vmatmul.bf16.gmra.mxu0 %v150
  %v278 = vpop.f32.mrf.mxu0
  %v279 = vadd.f32 %v258, %v278
  %v280 = vpop.f32.mrf.mxu0
  %v281 = vadd.f32 %v258, %v280
  %282 = vmatmul.bf16.gmra.mxu0 %v153
  %v283 = vpop.f32.mrf.mxu0
  %v284 = vadd.f32 %v258, %v283
  %v285 = vpop.f32.mrf.mxu0
  %v286 = vadd.f32 %v258, %v285
  %287 = vdwg.mxu0
  %v288 = vmax.f32 %v269, 0.0
  %v289 = vmax.f32 %v271, 0.0
  %v290 = vmax.f32 %v274, 0.0
  %v291 = vmax.f32 %v276, 0.0
  %v292 = vmax.f32 %v279, 0.0
  %v293 = vmax.f32 %v281, 0.0
  %v294 = vmax.f32 %v284, 0.0
  %v295 = vmax.f32 %v286, 0.0
  %v296 = vpack.c.bf16 %v289, %v288
  %v297 = vpack.c.bf16 %v291, %v290
  %v298 = vpack.c.bf16 %v293, %v292
  %v299 = vpack.c.bf16 %v295, %v294
  %v300 = vld [vmem:[%s4] sm:$0xf]
  %v301 = vld [vmem:[%s4 + $0x4] sm:$0xf]
  %v302 = vld [vmem:[%s4 + $0x8] sm:$0xf]
  %v303 = vld [vmem:[%s4 + $0xc] sm:$0xf]
  %v308 = vunpack.c.l.b16 %v300
  %v309 = vunpack.c.l.b16 %v301
  %v310 = vunpack.c.l.b16 %v302
  %v311 = vunpack.c.l.b16 %v303
  %v312 = vpack.c.b16 %v309, %v308
  %v313 = vpack.c.b16 %v311, %v310
  %v317 = vsel %vm212, %v296, 0
  %v320 = vsel %vm212, %v297, 0
  %v323 = vsel %vm212, %v298, 0
  %v326 = vsel %vm212, %v299, 0
  %328 = vmatpush.bf16.msra.mxu0 0
  %329 = vmatpush.bf16.msra.mxu0 0
  %330 = vmatpush.bf16.msra.mxu0 0
  %331 = vmatpush.bf16.msra.mxu0 0
  %332 = vmatpush.bf16.msra.mxu0 0
  %333 = vmatpush.bf16.msra.mxu0 0
  %334 = vmatpush.bf16.msra.mxu0 %v313
  %335 = vmatpush.bf16.msra.mxu0 %v312
  %336 = vmatmul.bf16.gmra.mxu0 %v317
  %v337 = vpop.f32.mrf.mxu0
  %v338 = vadd.f32 0.0, %v337
  %v339 = vpop.f32.mrf.mxu0
  %v340 = vadd.f32 0.0, %v339
  %341 = vmatmul.bf16.gmra.mxu0 %v320
  %v342 = vpop.f32.mrf.mxu0
  %v343 = vadd.f32 0.0, %v342
  %v344 = vpop.f32.mrf.mxu0
  %v345 = vadd.f32 0.0, %v344
  %346 = vmatmul.bf16.gmra.mxu0 %v323
  %v347 = vpop.f32.mrf.mxu0
  %v348 = vadd.f32 0.0, %v347
  %v349 = vpop.f32.mrf.mxu0
  %v350 = vadd.f32 0.0, %v349
  %351 = vmatmul.bf16.gmra.mxu0 %v326
  %v352 = vpop.f32.mrf.mxu0
  %v353 = vadd.f32 0.0, %v352
  %v354 = vpop.f32.mrf.mxu0
  %v355 = vadd.f32 0.0, %v354
  %356 = vdwg.mxu0
  %v357 = vpack.c.bf16 %v340, %v338
  %v358 = vpack.c.bf16 %v345, %v343
  %v359 = vpack.c.bf16 %v350, %v348
  %v360 = vpack.c.bf16 %v355, %v353
  %v361 = vperm.slane %v32, 2
  %362 = vmatpush.bf16.msra.mxu0 0
  %363 = vmatpush.bf16.msra.mxu0 0
  %364 = vmatpush.bf16.msra.mxu0 0
  %365 = vmatpush.bf16.msra.mxu0 0
  %366 = vmatpush.bf16.msra.mxu0 %v360
  %367 = vmatpush.bf16.msra.mxu0 %v359
  %368 = vmatpush.bf16.msra.mxu0 %v358
  %369 = vmatpush.bf16.msra.mxu0 %v357
  %370 = vmatmul.bf16.gmra.mxu0 %v144
  %v371 = vpop.f32.mrf.mxu0
  %v372 = vadd.f32 %v361, %v371
  %v373 = vpop.f32.mrf.mxu0
  %v374 = vadd.f32 %v361, %v373
  %375 = vmatmul.bf16.gmra.mxu0 %v147
  %v376 = vpop.f32.mrf.mxu0
  %v377 = vadd.f32 %v361, %v376
  %v378 = vpop.f32.mrf.mxu0
  %v379 = vadd.f32 %v361, %v378
  %380 = vmatmul.bf16.gmra.mxu0 %v150
  %v381 = vpop.f32.mrf.mxu0
  %v382 = vadd.f32 %v361, %v381
  %v383 = vpop.f32.mrf.mxu0
  %v384 = vadd.f32 %v361, %v383
  %385 = vmatmul.bf16.gmra.mxu0 %v153
  %v386 = vpop.f32.mrf.mxu0
  %v387 = vadd.f32 %v361, %v386
  %v388 = vpop.f32.mrf.mxu0
  %v389 = vadd.f32 %v361, %v388
  %390 = vdwg.mxu0
  %vm391 = vcmask 64512
  %392 = vst.msk [vmem:[%s6] sm:$0xff] %vm391, %v372
  %393 = vst.msk [vmem:[%s6 + $0x8] sm:$0xff] %vm391, %v374
  %394 = vst.msk [vmem:[%s6 + $0x10] sm:$0xff] %vm391, %v377
  %395 = vst.msk [vmem:[%s6 + $0x18] sm:$0xff] %vm391, %v379
  %396 = vst.msk [vmem:[%s6 + $0x20] sm:$0xff] %vm391, %v382
  %397 = vst.msk [vmem:[%s6 + $0x28] sm:$0xff] %vm391, %v384
  %398 = vst.msk [vmem:[%s6 + $0x30] sm:$0xff] %vm391, %v387
  %399 = vst.msk [vmem:[%s6 + $0x38] sm:$0xff] %vm391, %v389
  // Predicated region
  $region26: #{social_gcn_forward.1} parent=0 // pred_check
    _
  $region27: #{social_gcn_forward.1} parent=0 // pred_check_branch
    %401 = sbr.rel (0) target = $region29
  $region28: #{social_gcn_forward.1} parent=0 // pred_region
    _
  $region29: #{social_gcn_forward.1} parent=0 // pred_fallthru
    _
  // Predicated region
  $region30: #{social_gcn_forward.1} parent=0 // pred_check
    _
  $region31: #{social_gcn_forward.1} parent=0 // pred_check_branch
    %403 = sbr.rel (0) target = $region33
  $region32: #{social_gcn_forward.1} parent=0 // pred_region
    _
  $region33: #{social_gcn_forward.1} parent=0 // pred_fallthru
    _

</llo_original>
